<compile_context>
chip_gen: v7x
topology: tpu7x:2x2x1
jax: 0.10.0
libtpu: 0.0.40
codegen_flags: <defaults>
</compile_context>

<pallas_src>
import jax
import jax.numpy as jnp
from jax.experimental import pallas as pl
from jax.experimental.pallas import tpu as pltpu


# ----------------------------------------------------------------------------
# Faithful forward: the reference forward() body is `pass` -> returns None.
# ----------------------------------------------------------------------------
def position_embedding_forward():
    # TODO(synk): reference forward() is empty (`pass`); there is no compute
    # to lower into a Pallas kernel.  Returning None to match semantics.
    return None


def passthrough(x):
    """Integration-point form: if this module must appear in a graph, the
    correct implementation is to return the activation unchanged (no HBM
    read/write, no kernel launch)."""
    return x


# ----------------------------------------------------------------------------
# Demonstrative Pallas kernel (identity, aliased in->out).  NOT part of the
# reference semantics; exists only so the script runs a real pallas_call.
# ----------------------------------------------------------------------------
def _identity_kernel(x_ref, o_ref):
    o_ref[...] = x_ref[...]


def _pick_tile_rows(S, H, dtype):
    """Largest safe row-tile: dtype-aware sublane multiple, VMEM-budgeted,
    preferring an exact divisor of S (no masked tail tile)."""
    itemsize = jnp.dtype(dtype).itemsize
    # Sublane packing multiple: f32 -> 8, bf16 -> 16, int8/fp8 -> 32.
    sublane = max(8, 32 // max(itemsize, 1))
    # Conservative budget: 2 streams x 2 buffers x tile bytes <= ~8 MiB.
    # Fits v5e's 16 MiB scoped default with headroom; also safe on v7x's
    # smaller physical VMEM.  At H=128/f32 this still allows 4096-row tiles,
    # far past the ~512-row point where the copy hits the HBM roofline.
    budget_bytes = 8 * 1024 * 1024
    max_rows = max(sublane, budget_bytes // (4 * H * itemsize))
    if S <= max_rows:
        return S  # single full-array block; no grid overhead
    rows = max((max_rows // sublane) * sublane, sublane)
    # Prefer a divisor of S to avoid a masked partial-store tail iteration.
    while rows > sublane and S % rows != 0:
        rows -= sublane
    return rows


def copy_pallas(x, *, tile_s=None):
    """Tiled identity over the row axis, aliased in->out."""
    S, H = x.shape
    if tile_s is None:
        tile_s = _pick_tile_rows(S, H, x.dtype)
    return pl.pallas_call(
        _identity_kernel,
        out_shape=jax.ShapeDtypeStruct((S, H), x.dtype),
        grid=(pl.cdiv(S, tile_s),),
        in_specs=[pl.BlockSpec((tile_s, H), lambda i: (i, 0))],
        out_specs=pl.BlockSpec((tile_s, H), lambda i: (i, 0)),
        # Alias input buffer to output: no separate output HBM allocation.
        input_output_aliases={0: 0},
        compiler_params=pltpu.CompilerParams(
            # Row-tiles are independent -> parallel (lets v7x use both TCs).
            dimension_semantics=("parallel",),
        ),
    )(x)


if __name__ == "__main__":
    # 1) Faithful reference forward: no inputs, returns None.
    out = position_embedding_forward()
    assert out is None  # matches PyTorch `forward(self): pass`

    # 2) True no-op integration path: activation returned unchanged.
    key = jax.random.PRNGKey(0)
    x = jax.random.normal(key, (32, 128), dtype=jnp.float32)
    assert passthrough(x) is x

    # 3) Demonstrative Pallas kernel.  For this toy shape (32x128 = 16 KiB)
    #    the tile picker selects a single full-array block (grid of 1).
    #    The input may be aliased into the output, so keep a host-side
    #    reference copy for verification before invoking the kernel.
    x_host = jax.device_get(x)
    y = copy_pallas(x)
    jax.block_until_ready(y)
    assert y.shape == (32, 128)
    assert jnp.allclose(y, jnp.asarray(x_host))

    print("KERNEL_OK")
</pallas_src>

<mosaic_0001>
module attributes {stable_mosaic.version = 11 : i64} {
  func.func @_identity_kernel(%arg0: i32, %arg1: memref<32x128xf32, #tpu.memory_space<vmem>>, %arg2: memref<32x128xf32, #tpu.memory_space<vmem>>) attributes {dimension_semantics = [#tpu.dimension_semantics<parallel>], iteration_bounds = array<i64: 1>, scalar_prefetch = 0 : i64, scratch_operands = 0 : i64, tpu.core_type = #tpu.core_type<tc>, window_params = [{transform_indices = @transform_0, window_bounds = array<i64: 32, 128>}, {transform_indices = @transform_1, window_bounds = array<i64: 32, 128>}]} {
    %c0 = arith.constant 0 : index
    %c0_0 = arith.constant 0 : index
    %0 = vector.load %arg1[%c0, %c0_0] : memref<32x128xf32, #tpu.memory_space<vmem>>, vector<32x128xf32>
    %c0_1 = arith.constant 0 : index
    %c0_2 = arith.constant 0 : index
    %1 = vector.load %arg2[%c0_1, %c0_2] : memref<32x128xf32, #tpu.memory_space<vmem>>, vector<32x128xf32>
    tpu.vector_store %arg2[%c0_1, %c0_2], %0 {strides = array<i32>} : memref<32x128xf32, #tpu.memory_space<vmem>>, vector<32x128xf32>,
    return
  }
  func.func @transform_0(%arg0: i32) -> (i32, i32) {
    %c0_i32 = arith.constant 0 : i32
    %c0_i32_0 = arith.constant 0 : i32
    return %arg0, %c0_i32 : i32, i32
  }
  func.func @transform_1(%arg0: i32) -> (i32, i32) {
    %c0_i32 = arith.constant 0 : i32
    %c0_i32_0 = arith.constant 0 : i32
    return %arg0, %c0_i32 : i32, i32
  }
}

</mosaic_0001>

<llo_original>
// kernel: tpu_custom_call.1
$region0: #{tpu_custom_call.1}
  #allocation0 [shape = 'u32[]', space=smem, size = 0x4, offset = 0x4, fixed_abs, tag = 'smem constant byte address 0x4 - core index']
  #allocation1 [shape = 'u32[144,128]{1,0:T(1,128)}', space=vmem, size = 0x12000, scoped, tag = 'internal scratch']
  %s0 = inlined_call_operand.hbm [shape: f32[32,128], index: 0, kind: input, shape index: {}, may-alias: {0,1}]
  %s1 = inlined_call_operand.hbm [shape: f32[32,128], index: 1, kind: output, shape index: {}, may-alias: {0,1}]
  %s2 = sld [smem:[#allocation0]]
  $region18: #{tpu_custom_call.1} parent=0
    _
  %s4 = ssub.s32 1, %s2
  %s5 = scalar_select 0, %s4, %s2
  $region1: #{tpu_custom_call.1} parent=0
    #allocation2 [shape = 'u8[16384]{0}', space=vmem, size = 0x4000, scoped, tag = 'input window, operand 0, single buffered']
    #allocation3 [shape = 's32[1]{0}', space=sflag, size = 0x4, scoped, tag = 'scoped memory for tpu_custom_call.1']
    #allocation4 [shape = 's32[1]{0}', space=sflag, size = 0x4, scoped, tag = 'scoped memory for tpu_custom_call.1']
    #allocation5 [shape = 'u8[16384]{0}', space=vmem, size = 0x4000, scoped, tag = 'output window, operand 0, single buffered']
    %6 = vsyncpa [#allocation3], 0
    %7 = vsyncpa [#allocation4], 0
    // Predicated region
    $region2: #{tpu_custom_call.1} parent=1 // pred_check
      _
    $region3: #{tpu_custom_call.1} parent=1 // pred_check_branch
      %9 = sbr.rel (0) target = $region5
    $region4: #{tpu_custom_call.1} parent=1 // pred_region
      %s11 = ssub.s32 512, 512
      %12 = vsyncadd [#allocation3], %s11
      %s13 = sshll.u32 [#allocation2], 4
      %s14 = int_to_ptr.vmem [resolvable:$true] %s13
      %19 = dma.hbm_to_vmem [thread:$0]  %s0, 512, %s14, [#allocation3], 128, 128, 8
    $region5: #{tpu_custom_call.1} parent=1 // pred_fallthru
      _
    // Predicated region
    $region6: #{tpu_custom_call.1} parent=1 // pred_check
      _
    $region7: #{tpu_custom_call.1} parent=1 // pred_check_branch
      %21 = sbr.rel (0) target = $region9
    $region8: #{tpu_custom_call.1} parent=1 // pred_region
      %22 = dma.done [#allocation3], 512
    $region9: #{tpu_custom_call.1} parent=1 // pred_fallthru
      _
    %v23 = vld [vmem:[#allocation2] sm:$0xff]
    %v24 = vld [vmem:[#allocation2 + $0x8] sm:$0xff]
    %v25 = vld [vmem:[#allocation2 + $0x10] sm:$0xff]
    %v26 = vld [vmem:[#allocation2 + $0x18] sm:$0xff]
    %27 = vst [vmem:[#allocation5] sm:$0xff] %v23
    %28 = vst [vmem:[#allocation5 + $0x8] sm:$0xff] %v24
    %29 = vst [vmem:[#allocation5 + $0x10] sm:$0xff] %v25
    %30 = vst [vmem:[#allocation5 + $0x18] sm:$0xff] %v26
    // Predicated region
    $region10: #{tpu_custom_call.1} parent=1 // pred_check
      _
    $region11: #{tpu_custom_call.1} parent=1 // pred_check_branch
      %32 = sbr.rel (0) target = $region13
    $region12: #{tpu_custom_call.1} parent=1 // pred_region
      %s34 = ssub.s32 512, 512
      %35 = vsyncadd [#allocation4], %s34
      %s36 = sshll.u32 [#allocation5], 4
      %s37 = int_to_ptr.vmem [resolvable:$true] %s36
      %42 = dma.vmem_to_hbm [thread:$0]  %s37, 512, %s1, [#allocation4], 128, 128, 8
    $region13: #{tpu_custom_call.1} parent=1 // pred_fallthru
      _
    // Predicated region
    $region14: #{tpu_custom_call.1} parent=1 // pred_check
      _
    $region15: #{tpu_custom_call.1} parent=1 // pred_check_branch
      %44 = sbr.rel (0) target = $region17
    $region16: #{tpu_custom_call.1} parent=1 // pred_region
      %45 = dma.done [#allocation4], 512
    $region17: #{tpu_custom_call.1} parent=1 // pred_fallthru
      _
    %46 = vsyncpa [#allocation3], 1
    %47 = vsyncpa [#allocation4], 1

</llo_original>
